<compile_context>
chip_gen: v7x
topology: tpu7x:2x2x1
jax: 0.10.0
libtpu: 0.0.40
codegen_flags: <defaults>
</compile_context>

<pallas_src>
import functools

import jax
import jax.numpy as jnp
from jax import lax
from jax.experimental import pallas as pl
from jax.experimental.pallas import tpu as pltpu

BN_EPS = 1e-5


def _round_up(x, m):
    return (x + m - 1) // m * m


def _vmem_budget_bytes():
    """Usable VMEM budget: ~70% of the real per-core capacity, capped at 96 MiB."""
    cap = 64 * 1024 * 1024          # conservative fallback = v7x per-core VMEM
    try:
        cap = int(pltpu.get_tpu_info().vmem_capacity_bytes)
    except Exception:               # non-TPU tracing / API drift: keep fallback
        pass
    return min(int(cap * 0.70), 96 * 1024 * 1024)


def _pick_spatial_tile(sp, n_batch, budget_bytes, per_col_bytes, fixed_bytes, cap):
    """Spatial (lane) tile size: as large as the VMEM budget allows, lane-dense."""
    t = max(128, int((budget_bytes - fixed_bytes) // per_col_bytes))
    t = min(t, cap)
    if sp <= t:
        t = sp                               # single full-extent tile (always legal)
    else:
        t = max(128, (t // 128) * 128)       # multiple of 128; last tile is partial
    # v7x megacore: keep >= 2 grid programs so the second TensorCore gets work.
    if n_batch * pl.cdiv(sp, t) < 2 and sp >= 256:
        t = _round_up(pl.cdiv(sp, 2), 128)
    return t


# ----------------------------- Pallas kernels -------------------------------


def _conv_stats_kernel(w_ref, a_ref, conv_ref, stats_ref, *, sp, tms, mask_last):
    """Pass 1: conv tile (bf16-staged) + per-tile BN partial sums (from f32 acc).

    w_ref:    [Cout, CK]     bf16
    a_ref:    [1, CK, TMS]   bf16 (im2col tile of batch b; spatial cols on lanes)
    conv_ref: [1, Cout, TMS] bf16 (staged conv output, *without* bias)
    stats_ref:[1, Cout, 2]   f32  (per-tile sum / sum-of-squares)
    """
    acc = jnp.dot(w_ref[...], a_ref[0], preferred_element_type=jnp.float32)
    conv_ref[...] = acc[None].astype(conv_ref.dtype)

    # Per-channel partial sums for train-mode BatchNorm, from the f32 accumulator
    # (not the bf16 round-trip).  Staged conv is bias-free, so it is ~zero-mean
    # and the single-pass E[x^2]-E[x]^2 form stays well conditioned.
    # TODO(synk): switch to per-tile (mean, M2) + Chan's combine for extra safety.
    def _write_stats(v):
        s = jnp.sum(v, axis=1, keepdims=True)             # [Cout, 1]
        ss = jnp.sum(v * v, axis=1, keepdims=True)        # [Cout, 1]
        stats_ref[...] = jnp.concatenate([s, ss], axis=1)[None, :, :]

    if mask_last:
        is_last = pl.program_id(1) == pl.num_programs(1) - 1

        @pl.when(is_last)
        def _():
            col = (lax.broadcasted_iota(jnp.int32, acc.shape, 1)
                   + pl.program_id(1) * tms)
            _write_stats(jnp.where(col < sp, acc, 0.0))

        @pl.when(jnp.logical_not(is_last))
        def _():
            _write_stats(acc)
    else:
        _write_stats(acc)


def _bn_relu_kernel(conv_ref, p_ref, o_ref):
    """Pass 2: y = conv * scale + shift, ReLU; writes the NCHW tile directly.

    conv_ref: [1, Cout, TMS] bf16, p_ref: [Cout, 2] f32, o_ref: [1, Cout, TMS] f32.
    """
    conv = conv_ref[0].astype(jnp.float32)                # [Cout, TMS]
    scale = p_ref[:, 0:1]                                 # [Cout, 1]
    shift = p_ref[:, 1:2]                                 # [Cout, 1]
    o_ref[...] = jnp.maximum(conv * scale + shift, 0.0)[None]


# ------------------------------- wrapper -------------------------------------


def _im2col(x, k, stride, padding, oh, ow):
    """x: [N, Cin, H, W] -> [N, Cin*K*K, OH*OW]; CK ordered (cin, kh, kw)."""
    n, cin, _, _ = x.shape
    xp = jnp.pad(x, ((0, 0), (0, 0), (padding, padding), (padding, padding)))
    patches = []
    for kh in range(k):
        for kw in range(k):
            patches.append(
                xp[:, :, kh:kh + stride * oh:stride, kw:kw + stride * ow:stride])
    a = jnp.stack(patches, axis=2)          # [N, Cin, K*K, OH, OW]
    return a.reshape(n, cin * k * k, oh * ow)


@functools.partial(jax.jit, static_argnames=("kernel_size", "stride", "padding"))
def conv_block_forward(x, weight, bias, gamma, beta,
                       kernel_size=3, stride=2, padding=1):
    """x: [N, Cin, H, W] (NCHW). weight: [Cout, Cin, K, K]. Returns NCHW f32."""
    n, cin, h, w = x.shape
    cout = weight.shape[0]
    k = kernel_size
    oh = (h + 2 * padding - k) // stride + 1
    ow = (w + 2 * padding - k) // stride + 1
    sp = oh * ow
    m = n * sp
    ck = cin * k * k

    # bf16-first so the XLA-side im2col moves half the bytes; [N, CK, SP] layout
    # means no activation transpose anywhere in the pipeline.
    # TODO(synk): fuse im2col into pass 1 (x in memory_space=pl.ANY + manual halo
    # row-slab DMA, K*K accumulated dots) to drop this XLA-staged patch tensor.
    a = _im2col(x.astype(jnp.bfloat16), k, stride, padding, oh, ow)   # [N, CK, SP]
    w_m = weight.reshape(cout, ck).astype(jnp.bfloat16)               # [Cout, CK]

    budget = _vmem_budget_bytes()
    # Pass 1 working set per spatial column: double-buffered bf16 A + bf16 conv-out
    # blocks plus the f32 accumulator intermediate; fixed: double-buffered weights.
    tms1 = _pick_spatial_tile(sp, n, budget,
                              per_col_bytes=2 * (ck + cout) * 2 + 2 * cout * 4,
                              fixed_bytes=2 * cout * ck * 2, cap=4096)
    nspt1 = pl.cdiv(sp, tms1)
    # Pass 2 is a pure bf16->f32 stream; bigger tiles amortize per-step overhead.
    tms2 = _pick_spatial_tile(sp, n, budget,
                              per_col_bytes=2 * cout * (2 + 4) + 2 * cout * 4,
                              fixed_bytes=2 * cout * 2 * 4, cap=8192)
    nspt2 = pl.cdiv(sp, tms2)

    cparams = pltpu.CompilerParams(
        dimension_semantics=("parallel", "parallel"),
        vmem_limit_bytes=budget)

    # ---- pass 1: conv (matmul) + per-tile BN partial sums --------------------
    # TODO(synk): for small feature maps a single fused pallas_call (phase axis +
    # persistent VMEM conv tiles) would drop this HBM staging entirely.
    conv_s, stats = pl.pallas_call(
        functools.partial(_conv_stats_kernel, sp=sp, tms=tms1,
                          mask_last=(sp % tms1 != 0)),
        out_shape=(jax.ShapeDtypeStruct((n, cout, sp), jnp.bfloat16),
                   jax.ShapeDtypeStruct((n * nspt1, cout, 2), jnp.float32)),
        grid_spec=pltpu.PrefetchScalarGridSpec(
            num_scalar_prefetch=0, grid=(n, nspt1),
            in_specs=[pl.BlockSpec((cout, ck), lambda b, i: (0, 0)),
                      pl.BlockSpec((1, ck, tms1), lambda b, i: (b, 0, i))],
            out_specs=[pl.BlockSpec((1, cout, tms1), lambda b, i: (b, 0, i)),
                       pl.BlockSpec((1, cout, 2),
                                    lambda b, i: (b * nspt1 + i, 0, 0))]),
        compiler_params=cparams,
        cost_estimate=pl.CostEstimate(
            flops=2 * m * ck * cout, transcendentals=0,
            bytes_accessed=(a.size * 2 + w_m.size * 2 + n * cout * sp * 2
                            + n * nspt1 * cout * 2 * 4)),
    )(w_m, a)

    # ---- tiny cross-tile reduction + BN scale/shift folding (plain JAX) ------
    tot = jnp.sum(stats, axis=0)                          # [Cout, 2]
    mean = tot[:, 0] / m                                  # bias-free conv mean
    var = tot[:, 1] / m - mean * mean                     # biased var (train BN)
    scale = gamma.astype(jnp.float32) * lax.rsqrt(var + BN_EPS)
    # The conv bias shifts the conv output and its batch mean identically, so it
    # cancels exactly under train-mode BatchNorm (variance is bias-invariant) and
    # never needs to enter the kernels; `bias` is kept only for API parity.
    shift = beta.astype(jnp.float32) - mean * scale
    p = jnp.stack([scale, shift], axis=1)                 # [Cout, 2]

    # ---- pass 2: y = conv * scale + shift, ReLU — written straight to NCHW ---
    out = pl.pallas_call(
        _bn_relu_kernel,
        out_shape=jax.ShapeDtypeStruct((n, cout, sp), jnp.float32),
        grid_spec=pltpu.PrefetchScalarGridSpec(
            num_scalar_prefetch=0, grid=(n, nspt2),
            in_specs=[pl.BlockSpec((1, cout, tms2), lambda b, i: (b, 0, i)),
                      pl.BlockSpec((cout, 2), lambda b, i: (0, 0))],
            out_specs=pl.BlockSpec((1, cout, tms2), lambda b, i: (b, 0, i))),
        compiler_params=cparams,
        cost_estimate=pl.CostEstimate(
            flops=3 * m * cout, transcendentals=0,
            bytes_accessed=n * cout * sp * (2 + 4) + cout * 2 * 4),
    )(conv_s, p)

    # [N, Cout, OH*OW] -> [N, Cout, OH, OW]: splits the minor dim only (free).
    return out.reshape(n, cout, oh, ow)


# ------------------------------- reference -----------------------------------


def _reference(x, weight, bias, gamma, beta, stride=2, padding=1,
               matmul_dtype=jnp.float32, stage_dtype=None):
    """Pure-JAX reference matching PyTorch ConvBlock forward (train-mode BN).

    matmul_dtype=bfloat16 mimics the kernel's MXU input precision (f32 accum);
    stage_dtype=bfloat16 additionally mimics the bf16-staged conv intermediate
    that pass 2 re-reads (BN statistics still from the f32 conv, as in the kernel).
    """
    conv = lax.conv_general_dilated(
        x.astype(matmul_dtype), weight.astype(matmul_dtype),
        window_strides=(stride, stride),
        padding=[(padding, padding), (padding, padding)],
        dimension_numbers=("NCHW", "OIHW", "NCHW"),
        preferred_element_type=jnp.float32)
    b = bias.reshape(1, -1, 1, 1)
    y = conv + b
    mean = jnp.mean(y, axis=(0, 2, 3), keepdims=True)
    var = jnp.mean((y - mean) ** 2, axis=(0, 2, 3), keepdims=True)
    if stage_dtype is not None:
        y = conv.astype(stage_dtype).astype(jnp.float32) + b
    yn = (y - mean) * lax.rsqrt(var + BN_EPS)
    yn = yn * gamma.reshape(1, -1, 1, 1) + beta.reshape(1, -1, 1, 1)
    return jnp.maximum(yn, 0.0)


if __name__ == "__main__":
    key = jax.random.PRNGKey(0)
    k_x, k_w, k_b, k_g, k_be = jax.random.split(key, 5)

    N, Cin, H, W = 2, 4, 16, 16
    Cout, K, S, P = 8, 3, 2, 1

    x = jax.random.normal(k_x, (N, Cin, H, W), dtype=jnp.float32)
    weight = jax.random.normal(k_w, (Cout, Cin, K, K), dtype=jnp.float32) * 0.1
    bias = jax.random.normal(k_b, (Cout,), dtype=jnp.float32) * 0.1
    gamma = 1.0 + 0.1 * jax.random.normal(k_g, (Cout,), dtype=jnp.float32)
    beta = 0.1 * jax.random.normal(k_be, (Cout,), dtype=jnp.float32)

    out = conv_block_forward(x, weight, bias, gamma, beta,
                             kernel_size=K, stride=S, padding=P)
    out = jax.block_until_ready(out)
    assert out.shape == (N, Cout, H // S, W // S), out.shape

    # Tight check: reference emulating the kernel's bf16 MXU inputs and the bf16
    # conv staging (f32 accumulation + f32 BN stats, exactly like the kernel).
    ref_emul = jax.block_until_ready(_reference(
        x, weight, bias, gamma, beta, S, P,
        matmul_dtype=jnp.bfloat16, stage_dtype=jnp.bfloat16))
    assert jnp.allclose(out, ref_emul, atol=1e-2, rtol=1e-2), \
        float(jnp.max(jnp.abs(out - ref_emul)))

    # Loose check against the exact f32 PyTorch-semantics reference (the only
    # deltas are the bf16 matmul inputs and the bf16-staged conv intermediate).
    ref_f32 = jax.block_until_ready(
        _reference(x, weight, bias, gamma, beta, S, P))
    assert jnp.allclose(out, ref_f32, atol=2e-2, rtol=2e-2), \
        float(jnp.max(jnp.abs(out - ref_f32)))

    print("KERNEL_OK")
</pallas_src>

<mosaic_0001>
module attributes {stable_mosaic.version = 11 : i64} {
  func.func @_conv_stats_kernel(%arg0: i32, %arg1: i32, %arg2: memref<8x36xbf16, #tpu.memory_space<vmem>>, %arg3: memref<1x36x64xbf16, #tpu.memory_space<vmem>>, %arg4: memref<1x8x64xbf16, #tpu.memory_space<vmem>>, %arg5: memref<1x8x2xf32, #tpu.memory_space<vmem>>) attributes {dimension_semantics = [#tpu.dimension_semantics<parallel>, #tpu.dimension_semantics<parallel>], iteration_bounds = array<i64: 2, 1>, scalar_prefetch = 0 : i64, scratch_operands = 0 : i64, tpu.core_type = #tpu.core_type<tc>, window_params = [{pipeline_mode = #tpu.pipeline_mode<synchronous>, transform_indices = @transform_0, window_bounds = array<i64: 8, 36>}, {transform_indices = @transform_1, window_bounds = array<i64: 1, 36, 64>}, {transform_indices = @transform_2, window_bounds = array<i64: 1, 8, 64>}, {transform_indices = @transform_3, window_bounds = array<i64: 1, 8, 2>}]} {
    %c0 = arith.constant 0 : index
    %c0_0 = arith.constant 0 : index
    %0 = vector.load %arg2[%c0, %c0_0] : memref<8x36xbf16, #tpu.memory_space<vmem>>, vector<8x36xbf16>
    %c0_1 = arith.constant 0 : index
    %c0_2 = arith.constant 0 : index
    %c0_3 = arith.constant 0 : index
    %1 = vector.load %arg3[%c0_1, %c0_2, %c0_3] : memref<1x36x64xbf16, #tpu.memory_space<vmem>>, vector<1x36x64xbf16>
    %2 = vector.shape_cast %1 : vector<1x36x64xbf16> to vector<36x64xbf16>
    %cst = arith.constant dense<0.000000e+00> : vector<8x64xf32>
    %3 = tpu.matmul %0, %2, %cst {dimension_numbers = #tpu.dot_dimension_numbers<[1], [0], [0], [1], [0, 0, 1, 1], [], []>} : vector<8x36xbf16>, vector<36x64xbf16>, vector<8x64xf32> -> vector<8x64xf32>
    %4 = vector.shape_cast %3 : vector<8x64xf32> to vector<1x8x64xf32>
    %5 = arith.truncf %4 : vector<1x8x64xf32> to vector<1x8x64xbf16>
    %c0_4 = arith.constant 0 : index
    %c0_5 = arith.constant 0 : index
    %c0_6 = arith.constant 0 : index
    %6 = vector.load %arg4[%c0_4, %c0_5, %c0_6] : memref<1x8x64xbf16, #tpu.memory_space<vmem>>, vector<1x8x64xbf16>
    tpu.vector_store %arg4[%c0_4, %c0_5, %c0_6], %5 {strides = array<i32>} : memref<1x8x64xbf16, #tpu.memory_space<vmem>>, vector<1x8x64xbf16>,
    %cst_7 = arith.constant dense<0.000000e+00> : vector<8xf32>
    %7 = vector.multi_reduction <add>, %3, %cst_7 [1] : vector<8x64xf32> to vector<8xf32>
    %8 = vector.shape_cast %7 : vector<8xf32> to vector<8x1xf32>
    %9 = arith.mulf %3, %3 : vector<8x64xf32>
    %cst_8 = arith.constant dense<0.000000e+00> : vector<8xf32>
    %10 = vector.multi_reduction <add>, %9, %cst_8 [1] : vector<8x64xf32> to vector<8xf32>
    %11 = vector.shape_cast %10 : vector<8xf32> to vector<8x1xf32>
    %12 = tpu.concatenate %8, %11 in 1 : vector<8x1xf32>, vector<8x1xf32> -> vector<8x2xf32>
    %13 = vector.shape_cast %12 : vector<8x2xf32> to vector<1x8x2xf32>
    %c0_9 = arith.constant 0 : index
    %c0_10 = arith.constant 0 : index
    %c0_11 = arith.constant 0 : index
    %14 = vector.load %arg5[%c0_9, %c0_10, %c0_11] : memref<1x8x2xf32, #tpu.memory_space<vmem>>, vector<1x8x2xf32>
    tpu.vector_store %arg5[%c0_9, %c0_10, %c0_11], %13 {strides = array<i32>} : memref<1x8x2xf32, #tpu.memory_space<vmem>>, vector<1x8x2xf32>,
    return
  }
  func.func @transform_0(%arg0: i32, %arg1: i32) -> (i32, i32) {
    %c0_i32 = arith.constant 0 : i32
    %c0_i32_0 = arith.constant 0 : i32
    %c0_i32_1 = arith.constant 0 : i32
    return %c0_i32, %c0_i32_0 : i32, i32
  }
  func.func @transform_1(%arg0: i32, %arg1: i32) -> (i32, i32, i32) {
    %c0_i32 = arith.constant 0 : i32
    %c0_i32_0 = arith.constant 0 : i32
    return %arg0, %c0_i32, %arg1 : i32, i32, i32
  }
  func.func @transform_2(%arg0: i32, %arg1: i32) -> (i32, i32, i32) {
    %c0_i32 = arith.constant 0 : i32
    %c0_i32_0 = arith.constant 0 : i32
    return %arg0, %c0_i32, %arg1 : i32, i32, i32
  }
  func.func @transform_3(%arg0: i32, %arg1: i32) -> (i32, i32, i32) {
    %c1_i32 = arith.constant 1 : i32
    %0 = arith.muli %arg0, %c1_i32 : i32
    %1 = arith.addi %0, %arg1 : i32
    %c0_i32 = arith.constant 0 : i32
    %c0_i32_0 = arith.constant 0 : i32
    %c0_i32_1 = arith.constant 0 : i32
    return %1, %c0_i32, %c0_i32_0 : i32, i32, i32
  }
}

module attributes {stable_mosaic.version = 11 : i64} {
  func.func @_bn_relu_kernel(%arg0: i32, %arg1: i32, %arg2: memref<1x8x64xbf16, #tpu.memory_space<vmem>>, %arg3: memref<8x2xf32, #tpu.memory_space<vmem>>, %arg4: memref<1x8x64xf32, #tpu.memory_space<vmem>>) attributes {dimension_semantics = [#tpu.dimension_semantics<parallel>, #tpu.dimension_semantics<parallel>], iteration_bounds = array<i64: 2, 1>, scalar_prefetch = 0 : i64, scratch_operands = 0 : i64, tpu.core_type = #tpu.core_type<tc>, window_params = [{transform_indices = @transform_0, window_bounds = array<i64: 1, 8, 64>}, {pipeline_mode = #tpu.pipeline_mode<synchronous>, transform_indices = @transform_1, window_bounds = array<i64: 8, 2>}, {transform_indices = @transform_2, window_bounds = array<i64: 1, 8, 64>}]} {
    %c0 = arith.constant 0 : index
    %c0_0 = arith.constant 0 : index
    %c0_1 = arith.constant 0 : index
    %0 = vector.load %arg2[%c0, %c0_0, %c0_1] : memref<1x8x64xbf16, #tpu.memory_space<vmem>>, vector<1x8x64xbf16>
    %1 = vector.shape_cast %0 : vector<1x8x64xbf16> to vector<8x64xbf16>
    %2 = arith.extf %1 : vector<8x64xbf16> to vector<8x64xf32>
    %c0_2 = arith.constant 0 : index
    %c0_3 = arith.constant 0 : index
    %3 = vector.load %arg3[%c0_2, %c0_3] : memref<8x2xf32, #tpu.memory_space<vmem>>, vector<8x1xf32>
    %c0_4 = arith.constant 0 : index
    %c1 = arith.constant 1 : index
    %4 = vector.load %arg3[%c0_4, %c1] : memref<8x2xf32, #tpu.memory_space<vmem>>, vector<8x1xf32>
    %5 = vector.broadcast %3 : vector<8x1xf32> to vector<8x64xf32>
    %6 = arith.mulf %2, %5 : vector<8x64xf32>
    %7 = vector.broadcast %4 : vector<8x1xf32> to vector<8x64xf32>
    %8 = arith.addf %6, %7 : vector<8x64xf32>
    %cst = arith.constant 0.000000e+00 : f32
    %9 = vector.broadcast %cst : f32 to vector<8x64xf32>
    %10 = arith.maximumf %8, %9 : vector<8x64xf32>
    %11 = vector.shape_cast %10 : vector<8x64xf32> to vector<1x8x64xf32>
    %c0_5 = arith.constant 0 : index
    %c0_6 = arith.constant 0 : index
    %c0_7 = arith.constant 0 : index
    %12 = vector.load %arg4[%c0_5, %c0_6, %c0_7] : memref<1x8x64xf32, #tpu.memory_space<vmem>>, vector<1x8x64xf32>
    tpu.vector_store %arg4[%c0_5, %c0_6, %c0_7], %11 {strides = array<i32>} : memref<1x8x64xf32, #tpu.memory_space<vmem>>, vector<1x8x64xf32>,
    return
  }
  func.func @transform_0(%arg0: i32, %arg1: i32) -> (i32, i32, i32) {
    %c0_i32 = arith.constant 0 : i32
    %c0_i32_0 = arith.constant 0 : i32
    return %arg0, %c0_i32, %arg1 : i32, i32, i32
  }
  func.func @transform_1(%arg0: i32, %arg1: i32) -> (i32, i32) {
    %c0_i32 = arith.constant 0 : i32
    %c0_i32_0 = arith.constant 0 : i32
    %c0_i32_1 = arith.constant 0 : i32
    return %c0_i32, %c0_i32_0 : i32, i32
  }
  func.func @transform_2(%arg0: i32, %arg1: i32) -> (i32, i32, i32) {
    %c0_i32 = arith.constant 0 : i32
    %c0_i32_0 = arith.constant 0 : i32
    return %arg0, %c0_i32, %arg1 : i32, i32, i32
  }
}

</mosaic_0001>

<llo_original>
// kernel: conv_block_forward.3
$region0: #{conv_block_forward.3}
  #allocation0 [shape = 'u32[]', space=smem, size = 0x4, offset = 0x4, fixed_abs, tag = 'smem constant byte address 0x4 - core index']
  #allocation1 [shape = 'u32[144,128]{1,0:T(1,128)}', space=vmem, size = 0x12000, scoped, tag = 'internal scratch']
  %s0 = inlined_call_operand.vmem [shape: bf16[2,8,64], index: 0, kind: input, shape index: {}]
  %s1 = inlined_call_operand.vmem [shape: f32[8,2], index: 1, kind: input, shape index: {}]
  %s2 = inlined_call_operand.vmem [shape: f32[2,8,64], index: 2, kind: output, shape index: {}]
  %s3 = sld [smem:[#allocation0]]
  $region41: #{conv_block_forward.3} parent=0
    _
  %s5 = ssub.s32 1, %s3
  %s6 = scalar_select 0, %s5, %s3
  loop: start=0, step=1, limit=4
  $region2: #{conv_block_forward.3} parent=0 // loop_pre_header
    _
  $region3: #{conv_block_forward.3} parent=0 // loop_header
    %s8 = sphi 0, %s12
    %p9 = scmp.ge.s32.totalorder %s8, 4
    %s15 = sphi 0, %s27
    %s16 = sphi 0, %s23
    %s17 = sphi 0, %s15
    %s18 = sphi 0, %s16
    %s19 = sphi 0, %s17
    %s20 = sphi 0, %s18
    %s32 = sphi 0, %s34
    %s35 = sphi 0, %s32
    %s36 = sphi 0, %s35
    %s52 = sphi 0, %s36
    %s56 = sphi 0, %s56
    %s58 = sphi 0, %s56
    %s59 = sphi 0, %s58
    %s73 = sphi 0, %s59
    %s81 = sphi 0, %s83
    %s84 = sphi 0, %s81
    %s85 = sphi 0, %s84
    %s101 = sphi 0, %s85
  $region4: #{conv_block_forward.3} parent=0 // loop_header_branch
    %11 = sbr.rel (%p9) target = $region8
  $region5: #{conv_block_forward.3} parent=0 // loop_body
    %s13 = ssub.s32 %s8, 1
    %s14 = ssub.s32 %s8, 2
    %s21 = sadd.s32 1, %s16
    %p22 = scmp.ge.s32.totalorder %s21, 1
    %s23 = scalar_select %p22, 0, %s21
    %s24 = sadd.s32 1, %s15
    %s25 = scalar_select %p22, %s24, %s15
    %p26 = scmp.ge.s32.totalorder %s25, 2
    %s27 = scalar_select %p26, 0, %s25
    %s28 = ssub.s32 %s15, %s27
    %s29 = ssub.s32 %s16, %s23
    %s30 = sor.u32 %s28, %s29
    %p31 = scmp.eq.s32.totalorder %s30, 0
    %s33 = sadd.s32 %s32, 1
    %s34 = scalar_select %p31, %s32, %s33
    %p37 = pneg %p31
    %p38 = scmp.eq.s32.totalorder %s8, 1
    %p39 = por %p37, %p38
    %p40 = scmp.ne.s32.totalorder %s32, %s35
    %p41 = scmp.eq.s32.totalorder %s8, 0
    %p42 = por %p40, %p41
    %p43 = scmp.ne.s32.totalorder %s32, %s35
    %p44 = scmp.eq.s32.totalorder %s13, 1
    %p45 = por %p43, %p44
    %p46 = scmp.ne.s32.totalorder %s35, %s36
    %p47 = scmp.eq.s32.totalorder %s13, 0
    %p48 = por %p46, %p47
    %p49 = scmp.ne.s32.totalorder %s35, %s36
    %p50 = scmp.eq.s32.totalorder %s14, 1
    %p51 = por %p49, %p50
    %p53 = scmp.ne.s32.totalorder %s36, %s52
    %p54 = scmp.eq.s32.totalorder %s14, 0
    %p55 = por %p53, %p54
    %s57 = sadd.s32 %s56, 1
    %p60 = scmp.eq.s32.totalorder %s8, 1
    %p61 = scmp.ne.s32.totalorder %s56, %s58
    %p62 = scmp.eq.s32.totalorder %s8, 0
    %p63 = por %p61, %p62
    %p64 = scmp.ne.s32.totalorder %s56, %s58
    %p65 = scmp.eq.s32.totalorder %s13, 1
    %p66 = por %p64, %p65
    %p67 = scmp.ne.s32.totalorder %s58, %s59
    %p68 = scmp.eq.s32.totalorder %s13, 0
    %p69 = por %p67, %p68
    %p70 = scmp.ne.s32.totalorder %s58, %s59
    %p71 = scmp.eq.s32.totalorder %s14, 1
    %p72 = por %p70, %p71
    %p74 = scmp.ne.s32.totalorder %s59, %s73
    %p75 = scmp.eq.s32.totalorder %s14, 0
    %p76 = por %p74, %p75
    %s77 = ssub.s32 %s15, %s27
    %s78 = ssub.s32 %s16, %s23
    %s79 = sor.u32 %s77, %s78
    %p80 = scmp.eq.s32.totalorder %s79, 0
    %s82 = sadd.s32 %s81, 1
    %s83 = scalar_select %p80, %s81, %s82
    %p86 = pneg %p80
    %p87 = scmp.eq.s32.totalorder %s8, 1
    %p88 = por %p86, %p87
    %p89 = scmp.ne.s32.totalorder %s81, %s84
    %p90 = scmp.eq.s32.totalorder %s8, 0
    %p91 = por %p89, %p90
    %p92 = scmp.ne.s32.totalorder %s81, %s84
    %p93 = scmp.eq.s32.totalorder %s13, 1
    %p94 = por %p92, %p93
    %p95 = scmp.ne.s32.totalorder %s84, %s85
    %p96 = scmp.eq.s32.totalorder %s13, 0
    %p97 = por %p95, %p96
    %p98 = scmp.ne.s32.totalorder %s84, %s85
    %p99 = scmp.eq.s32.totalorder %s14, 1
    %p100 = por %p98, %p99
    %p102 = scmp.ne.s32.totalorder %s85, %s101
    %p103 = scmp.eq.s32.totalorder %s14, 0
    %p104 = por %p102, %p103
    %p105 = scmp.le.s32.totalorder 1, %s8
    %p106 = scmp.lt.s32.totalorder %s8, 3
    %p107 = pnand %p105, %p106
    %p108 = pneg %p107
    // Predicated region
    $region9: #{conv_block_forward.3} parent=5 // pred_check
      _
    $region10: #{conv_block_forward.3} parent=5 // pred_check_branch
      %110 = sbr.rel (%p107) target = $region12
    $region11: #{conv_block_forward.3} parent=5 // pred_region
      %s111 = ssub.s32 %s8, 1
      // Predicated region
      $region13: #{conv_block_forward.3} parent=11 // pred_check
        %p112 = pneg %p69
      $region14: #{conv_block_forward.3} parent=11 // pred_check_branch
        %114 = sbr.rel (%p112) target = $region16
      $region15: #{conv_block_forward.3} parent=11 // pred_region
        _
      $region16: #{conv_block_forward.3} parent=11 // pred_fallthru
        _
    $region12: #{conv_block_forward.3} parent=5 // pred_fallthru
      _
    %p115 = scmp.lt.s32.totalorder %s8, 2
    // Predicated region
    $region17: #{conv_block_forward.3} parent=5 // pred_check
      %p116 = pneg %p115
    $region18: #{conv_block_forward.3} parent=5 // pred_check_branch
      %118 = sbr.rel (%p116) target = $region20
    $region19: #{conv_block_forward.3} parent=5 // pred_region
      // Predicated region
      $region21: #{conv_block_forward.3} parent=19 // pred_check
        %p119 = pneg %p42
      $region22: #{conv_block_forward.3} parent=19 // pred_check_branch
        %121 = sbr.rel (%p119) target = $region24
      $region23: #{conv_block_forward.3} parent=19 // pred_region
        %p122 = scmp.lt.s32.totalorder %s15, 1
        %s123 = scalar_select %p122, %s15, 1
        %p124 = scmp.lt.s32.totalorder %s16, 0
        %s125 = scalar_select %p124, %s16, 0
        %s126 = sadd.s32 %s125, %s123
        %s127 = smul.addr %s126, 4
        %s128 = scalar_lea.vmem %s0, %s127
      $region24: #{conv_block_forward.3} parent=19 // pred_fallthru
        _
    $region20: #{conv_block_forward.3} parent=5 // pred_fallthru
      _
    %p129 = scmp.le.s32.totalorder 1, %s8
    %p130 = scmp.lt.s32.totalorder %s8, 3
    %p131 = pnand %p129, %p130
    %p132 = pneg %p131
    // Predicated region
    $region25: #{conv_block_forward.3} parent=5 // pred_check
      _
    $region26: #{conv_block_forward.3} parent=5 // pred_check_branch
      %134 = sbr.rel (%p131) target = $region28
    $region27: #{conv_block_forward.3} parent=5 // pred_region
      %s135 = ssub.s32 %s8, 1
      %p136 = scmp.lt.s32.totalorder %s17, 1
      %s137 = scalar_select %p136, %s17, 1
      %p138 = scmp.lt.s32.totalorder %s18, 0
      %s139 = scalar_select %p138, %s18, 0
      %s140 = sadd.s32 %s139, %s137
      %s141 = smul.addr %s140, 4
      %s142 = scalar_lea.vmem %s0, %s141
      %p143 = pneg %p48
      %p144 = pneg %p45
      %p145 = pneg %p69
      %p146 = pneg %p66
      %p147 = pneg %p97
      %p148 = pneg %p94
      %p149 = scmp.lt.s32.totalorder %s17, 1
      %s150 = scalar_select %p149, %s17, 1
      %p151 = scmp.lt.s32.totalorder %s18, 0
      %s152 = scalar_select %p151, %s18, 0
      %s153 = sadd.s32 %s152, %s150
      %s154 = smul.addr %s153, 8
      %s155 = scalar_lea.vmem %s2, %s154
      %p156 = scmp.lt.s32.totalorder %s17, 1
      %s157 = scalar_select %p156, %s17, 1
      %p158 = scmp.lt.s32.totalorder %s18, 0
      %s159 = scalar_select %p158, %s18, 0
      %s160 = sadd.s32 %s159, %s157
      %s161 = smul.addr %s160, 4
      %s162 = scalar_lea.vmem %s0, %s161
      %p163 = scmp.lt.s32.totalorder %s17, 1
      %s164 = scalar_select %p163, %s17, 1
      %p165 = scmp.lt.s32.totalorder %s18, 0
      %s166 = scalar_select %p165, %s18, 0
      %s167 = sadd.s32 %s166, %s164
      %s168 = smul.addr %s167, 8
      %s169 = scalar_lea.vmem %s2, %s168
      %v170 = vld [vmem:[%s162] sm:$0xf]
      %v171 = vunpack.c.l.bf16 %v170
      %v172 = vld [vmem:[%s1] sm:$0xff]
      %174 = vset.pattern.permute.xlu0 0
      %175 = vperm.xlu0 %174, %v172
      %v176 = vpop.permute.xlu0 %175
      %v178 = vmul.f32 %v171, %v176
      %179 = vset.pattern.permute.xlu0 1
      %180 = vperm.xlu0 %179, %v172
      %v181 = vpop.permute.xlu0 %180
      %v183 = vadd.f32 %v178, %v181
      %v184 = vmax.f32 %v183, 0.0
      %vm185 = vcmask 523264
      %186 = vst.msk [vmem:[%s169] sm:$0xff] %vm185, %v184
      %p187 = scmp.lt.s32.totalorder %s17, 1
      %s188 = scalar_select %p187, %s17, 1
      %p189 = scmp.lt.s32.totalorder %s18, 0
      %s190 = scalar_select %p189, %s18, 0
      %s191 = sadd.s32 %s190, %s188
      %s192 = smul.addr %s191, 8
      %s193 = scalar_lea.vmem %s2, %s192
      // Predicated region
      $region29: #{conv_block_forward.3} parent=27 // pred_check
        %p194 = pneg %p94
      $region30: #{conv_block_forward.3} parent=27 // pred_check_branch
        %196 = sbr.rel (%p194) target = $region32
      $region31: #{conv_block_forward.3} parent=27 // pred_region
        _
      $region32: #{conv_block_forward.3} parent=27 // pred_fallthru
        _
    $region28: #{conv_block_forward.3} parent=5 // pred_fallthru
      _
    %p197 = scmp.le.s32.totalorder 2, %s8
    // Predicated region
    $region33: #{conv_block_forward.3} parent=5 // pred_check
      %p198 = pneg %p197
    $region34: #{conv_block_forward.3} parent=5 // pred_check_branch
      %200 = sbr.rel (%p198) target = $region36
    $region35: #{conv_block_forward.3} parent=5 // pred_region
      %s201 = ssub.s32 %s8, 2
      // Predicated region
      $region37: #{conv_block_forward.3} parent=35 // pred_check
        %p202 = pneg %p100
      $region38: #{conv_block_forward.3} parent=35 // pred_check_branch
        %204 = sbr.rel (%p202) target = $region40
      $region39: #{conv_block_forward.3} parent=35 // pred_region
        %p205 = scmp.lt.s32.totalorder %s19, 1
        %s206 = scalar_select %p205, %s19, 1
        %p207 = scmp.lt.s32.totalorder %s20, 0
        %s208 = scalar_select %p207, %s20, 0
        %s209 = sadd.s32 %s208, %s206
        %s210 = smul.addr %s209, 8
        %s211 = scalar_lea.vmem %s2, %s210
      $region40: #{conv_block_forward.3} parent=35 // pred_fallthru
        _
    $region36: #{conv_block_forward.3} parent=5 // pred_fallthru
      _
  $region6: #{conv_block_forward.3} parent=0 // loop_footer
    %s12 = sadd.s32 1, %s8
  $region7: #{conv_block_forward.3} parent=0 // loop_footer_branch
    %7 = sbr.rel target = $region3
  $region8: #{conv_block_forward.3} parent=0 // loop_exit
    _

// kernel: conv_block_forward.2
$region0: #{conv_block_forward.2}
  #allocation0 [shape = 'u32[]', space=smem, size = 0x4, offset = 0x4, fixed_abs, tag = 'smem constant byte address 0x4 - core index']
  #allocation1 [shape = 'u32[144,128]{1,0:T(1,128)}', space=vmem, size = 0x12000, scoped, tag = 'internal scratch']
  %s0 = inlined_call_operand.vmem [shape: bf16[8,36], index: 0, kind: input, shape index: {}]
  %s1 = inlined_call_operand.vmem [shape: bf16[2,36,64], index: 1, kind: input, shape index: {}]
  %s2 = inlined_call_operand.vmem [shape: bf16[2,8,64], index: 2, kind: output, shape index: {0}]
  %s3 = inlined_call_operand.vmem [shape: f32[2,8,2], index: 3, kind: output, shape index: {1}]
  %4 = xla_tuple %s2, %s3
  %s5 = sld [smem:[#allocation0]]
  $region49: #{conv_block_forward.2} parent=0
    _
  %s7 = ssub.s32 1, %s5
  %s8 = scalar_select 0, %s7, %s5
  loop: start=0, step=1, limit=4
  $region2: #{conv_block_forward.2} parent=0 // loop_pre_header
    _
  $region3: #{conv_block_forward.2} parent=0 // loop_header
    %s10 = sphi 0, %s14
    %p11 = scmp.ge.s32.totalorder %s10, 4
    %s17 = sphi 0, %s29
    %s18 = sphi 0, %s25
    %s19 = sphi 0, %s17
    %s20 = sphi 0, %s18
    %s21 = sphi 0, %s19
    %s22 = sphi 0, %s20
    %s30 = sphi 0, %s30
    %s32 = sphi 0, %s30
    %s33 = sphi 0, %s32
    %s47 = sphi 0, %s33
    %s55 = sphi 0, %s57
    %s58 = sphi 0, %s55
    %s59 = sphi 0, %s58
    %s75 = sphi 0, %s59
    %s83 = sphi 0, %s85
    %s86 = sphi 0, %s83
    %s87 = sphi 0, %s86
    %s103 = sphi 0, %s87
    %s111 = sphi 0, %s113
    %s114 = sphi 0, %s111
    %s115 = sphi 0, %s114
    %s131 = sphi 0, %s115
  $region4: #{conv_block_forward.2} parent=0 // loop_header_branch
    %13 = sbr.rel (%p11) target = $region8
  $region5: #{conv_block_forward.2} parent=0 // loop_body
    %s15 = ssub.s32 %s10, 1
    %s16 = ssub.s32 %s10, 2
    %s23 = sadd.s32 1, %s18
    %p24 = scmp.ge.s32.totalorder %s23, 1
    %s25 = scalar_select %p24, 0, %s23
    %s26 = sadd.s32 1, %s17
    %s27 = scalar_select %p24, %s26, %s17
    %p28 = scmp.ge.s32.totalorder %s27, 2
    %s29 = scalar_select %p28, 0, %s27
    %s31 = sadd.s32 %s30, 1
    %p34 = scmp.eq.s32.totalorder %s10, 1
    %p35 = scmp.ne.s32.totalorder %s30, %s32
    %p36 = scmp.eq.s32.totalorder %s10, 0
    %p37 = por %p35, %p36
    %p38 = scmp.ne.s32.totalorder %s30, %s32
    %p39 = scmp.eq.s32.totalorder %s15, 1
    %p40 = por %p38, %p39
    %p41 = scmp.ne.s32.totalorder %s32, %s33
    %p42 = scmp.eq.s32.totalorder %s15, 0
    %p43 = por %p41, %p42
    %p44 = scmp.ne.s32.totalorder %s32, %s33
    %p45 = scmp.eq.s32.totalorder %s16, 1
    %p46 = por %p44, %p45
    %p48 = scmp.ne.s32.totalorder %s33, %s47
    %p49 = scmp.eq.s32.totalorder %s16, 0
    %p50 = por %p48, %p49
    %s51 = ssub.s32 %s17, %s29
    %s52 = ssub.s32 %s18, %s25
    %s53 = sor.u32 %s51, %s52
    %p54 = scmp.eq.s32.totalorder %s53, 0
    %s56 = sadd.s32 %s55, 1
    %s57 = scalar_select %p54, %s55, %s56
    %p60 = pneg %p54
    %p61 = scmp.eq.s32.totalorder %s10, 1
    %p62 = por %p60, %p61
    %p63 = scmp.ne.s32.totalorder %s55, %s58
    %p64 = scmp.eq.s32.totalorder %s10, 0
    %p65 = por %p63, %p64
    %p66 = scmp.ne.s32.totalorder %s55, %s58
    %p67 = scmp.eq.s32.totalorder %s15, 1
    %p68 = por %p66, %p67
    %p69 = scmp.ne.s32.totalorder %s58, %s59
    %p70 = scmp.eq.s32.totalorder %s15, 0
    %p71 = por %p69, %p70
    %p72 = scmp.ne.s32.totalorder %s58, %s59
    %p73 = scmp.eq.s32.totalorder %s16, 1
    %p74 = por %p72, %p73
    %p76 = scmp.ne.s32.totalorder %s59, %s75
    %p77 = scmp.eq.s32.totalorder %s16, 0
    %p78 = por %p76, %p77
    %s79 = ssub.s32 %s17, %s29
    %s80 = ssub.s32 %s18, %s25
    %s81 = sor.u32 %s79, %s80
    %p82 = scmp.eq.s32.totalorder %s81, 0
    %s84 = sadd.s32 %s83, 1
    %s85 = scalar_select %p82, %s83, %s84
    %p88 = pneg %p82
    %p89 = scmp.eq.s32.totalorder %s10, 1
    %p90 = por %p88, %p89
    %p91 = scmp.ne.s32.totalorder %s83, %s86
    %p92 = scmp.eq.s32.totalorder %s10, 0
    %p93 = por %p91, %p92
    %p94 = scmp.ne.s32.totalorder %s83, %s86
    %p95 = scmp.eq.s32.totalorder %s15, 1
    %p96 = por %p94, %p95
    %p97 = scmp.ne.s32.totalorder %s86, %s87
    %p98 = scmp.eq.s32.totalorder %s15, 0
    %p99 = por %p97, %p98
    %p100 = scmp.ne.s32.totalorder %s86, %s87
    %p101 = scmp.eq.s32.totalorder %s16, 1
    %p102 = por %p100, %p101
    %p104 = scmp.ne.s32.totalorder %s87, %s103
    %p105 = scmp.eq.s32.totalorder %s16, 0
    %p106 = por %p104, %p105
    %s107 = sadd.s32 %s17, %s18
    %s108 = sadd.s32 %s29, %s25
    %s109 = ssub.s32 %s107, %s108
    %p110 = scmp.eq.s32.totalorder %s109, 0
    %s112 = sadd.s32 %s111, 1
    %s113 = scalar_select %p110, %s111, %s112
    %p116 = pneg %p110
    %p117 = scmp.eq.s32.totalorder %s10, 1
    %p118 = por %p116, %p117
    %p119 = scmp.ne.s32.totalorder %s111, %s114
    %p120 = scmp.eq.s32.totalorder %s10, 0
    %p121 = por %p119, %p120
    %p122 = scmp.ne.s32.totalorder %s111, %s114
    %p123 = scmp.eq.s32.totalorder %s15, 1
    %p124 = por %p122, %p123
    %p125 = scmp.ne.s32.totalorder %s114, %s115
    %p126 = scmp.eq.s32.totalorder %s15, 0
    %p127 = por %p125, %p126
    %p128 = scmp.ne.s32.totalorder %s114, %s115
    %p129 = scmp.eq.s32.totalorder %s16, 1
    %p130 = por %p128, %p129
    %p132 = scmp.ne.s32.totalorder %s115, %s131
    %p133 = scmp.eq.s32.totalorder %s16, 0
    %p134 = por %p132, %p133
    %p135 = scmp.le.s32.totalorder 1, %s10
    %p136 = scmp.lt.s32.totalorder %s10, 3
    %p137 = pnand %p135, %p136
    %p138 = pneg %p137
    // Predicated region
    $region9: #{conv_block_forward.2} parent=5 // pred_check
      _
    $region10: #{conv_block_forward.2} parent=5 // pred_check_branch
      %140 = sbr.rel (%p137) target = $region12
    $region11: #{conv_block_forward.2} parent=5 // pred_region
      %s141 = ssub.s32 %s10, 1
      // Predicated region
      $region13: #{conv_block_forward.2} parent=11 // pred_check
        %p142 = pneg %p43
      $region14: #{conv_block_forward.2} parent=11 // pred_check_branch
        %144 = sbr.rel (%p142) target = $region16
      $region15: #{conv_block_forward.2} parent=11 // pred_region
        _
      $region16: #{conv_block_forward.2} parent=11 // pred_fallthru
        _
    $region12: #{conv_block_forward.2} parent=5 // pred_fallthru
      _
    %p145 = scmp.lt.s32.totalorder %s10, 2
    // Predicated region
    $region17: #{conv_block_forward.2} parent=5 // pred_check
      %p146 = pneg %p145
    $region18: #{conv_block_forward.2} parent=5 // pred_check_branch
      %148 = sbr.rel (%p146) target = $region20
    $region19: #{conv_block_forward.2} parent=5 // pred_region
      // Predicated region
      $region21: #{conv_block_forward.2} parent=19 // pred_check
        %p149 = pneg %p65
      $region22: #{conv_block_forward.2} parent=19 // pred_check_branch
        %151 = sbr.rel (%p149) target = $region24
      $region23: #{conv_block_forward.2} parent=19 // pred_region
        %p152 = scmp.lt.s32.totalorder %s17, 1
        %s153 = scalar_select %p152, %s17, 1
        %p154 = scmp.lt.s32.totalorder %s18, 0
        %s155 = scalar_select %p154, %s18, 0
        %s156 = smul.addr %s153, 5
        %s157 = sadd.s32 %s155, %s156
        %s158 = smul.addr %s157, 4
        %s159 = scalar_lea.vmem %s1, %s158
      $region24: #{conv_block_forward.2} parent=19 // pred_fallthru
        _
    $region20: #{conv_block_forward.2} parent=5 // pred_fallthru
      _
    %p160 = scmp.le.s32.totalorder 1, %s10
    %p161 = scmp.lt.s32.totalorder %s10, 3
    %p162 = pnand %p160, %p161
    %p163 = pneg %p162
    // Predicated region
    $region25: #{conv_block_forward.2} parent=5 // pred_check
      _
    $region26: #{conv_block_forward.2} parent=5 // pred_check_branch
      %165 = sbr.rel (%p162) target = $region28
    $region27: #{conv_block_forward.2} parent=5 // pred_region
      %s166 = ssub.s32 %s10, 1
      %p167 = pneg %p43
      %p168 = pneg %p40
      %p169 = scmp.lt.s32.totalorder %s19, 1
      %s170 = scalar_select %p169, %s19, 1
      %p171 = scmp.lt.s32.totalorder %s20, 0
      %s172 = scalar_select %p171, %s20, 0
      %s173 = smul.addr %s170, 5
      %s174 = sadd.s32 %s172, %s173
      %s175 = smul.addr %s174, 4
      %s176 = scalar_lea.vmem %s1, %s175
      %p177 = pneg %p71
      %p178 = pneg %p68
      %p179 = pneg %p99
      %p180 = pneg %p96
      %p181 = scmp.lt.s32.totalorder %s19, 1
      %s182 = scalar_select %p181, %s19, 1
      %p183 = scmp.lt.s32.totalorder %s20, 0
      %s184 = scalar_select %p183, %s20, 0
      %s185 = sadd.s32 %s184, %s182
      %s186 = smul.addr %s185, 4
      %s187 = scalar_lea.vmem %s2, %s186
      %p188 = pneg %p127
      %p189 = pneg %p124
      %s190 = sadd.s32 %s19, %s20
      %p191 = scmp.lt.s32.totalorder %s190, 1
      %s192 = scalar_select %p191, %s190, 1
      %s193 = smul.addr %s192, 8
      %s194 = scalar_lea.vmem %s3, %s193
      %p195 = scmp.lt.s32.totalorder %s19, 1
      %s196 = scalar_select %p195, %s19, 1
      %p197 = scmp.lt.s32.totalorder %s20, 0
      %s198 = scalar_select %p197, %s20, 0
      %s199 = smul.addr %s196, 5
      %s200 = sadd.s32 %s198, %s199
      %s201 = smul.addr %s200, 4
      %s202 = scalar_lea.vmem %s1, %s201
      %p203 = scmp.lt.s32.totalorder %s19, 1
      %s204 = scalar_select %p203, %s19, 1
      %p205 = scmp.lt.s32.totalorder %s20, 0
      %s206 = scalar_select %p205, %s20, 0
      %s207 = sadd.s32 %s206, %s204
      %s208 = smul.addr %s207, 4
      %s209 = scalar_lea.vmem %s2, %s208
      %s210 = sadd.s32 %s19, %s20
      %p211 = scmp.lt.s32.totalorder %s210, 1
      %s212 = scalar_select %p211, %s210, 1
      %s213 = smul.addr %s212, 8
      %s214 = scalar_lea.vmem %s3, %s213
      %s215 = sadd.s32 %s19, %s20
      %v217 = vld [vmem:[%s0] sm:$0xf]
      %v218 = vld [vmem:[%s202] sm:$0xf]
      %v219 = vld [vmem:[%s202 + $0x4] sm:$0xf]
      %v220 = vld [vmem:[%s202 + $0x8] sm:$0xf]
      %v221 = vld [vmem:[%s202 + $0xc] sm:$0xf]
      %v222 = vld [vmem:[%s202 + $0x10] sm:$0x3]
      %v228 = vunpack.c.l.b16 %v218
      %v229 = vunpack.c.l.b16 %v219
      %v230 = vunpack.c.l.b16 %v220
      %v231 = vunpack.c.l.b16 %v221
      %v232 = vunpack.c.l.b16 %v222
      %v233 = vpack.c.b16 %v229, %v228
      %v234 = vpack.c.b16 %v231, %v230
      %v235 = vpack.c.b16 %v232, %v232
      %vm238 = vcmask 293888
      %v240 = vsel %vm238, %v217, 0
      %vm242 = vcmask 1041408
      %v244 = vsel %vm242, %v235, 0
      %246 = vmatprep.subr.bf16.mxu0 0
      %247 = vmatpush1.bf16.msra.mxu0 %v233
      %248 = vmatprep.subr.bf16.mxu0 0
      %249 = vmatpush1.bf16.msra.mxu0 %v234
      %250 = vmatprep.subr.bf16.mxu0 0
      %251 = vmatpush1.bf16.msra.mxu0 %v244
      %252 = vmatprep.subr.bf16.mxu0 0
      %253 = vmatpush1.bf16.msra.mxu0 0
      %254 = vmatprep.subr.bf16.mxu0 0
      %255 = vmatpush1.bf16.msra.mxu0 0
      %256 = vmatprep.subr.bf16.mxu0 0
      %257 = vmatpush1.bf16.msra.mxu0 0
      %258 = vmatprep.subr.bf16.mxu0 0
      %259 = vmatpush1.bf16.msra.mxu0 0
      %260 = vmatprep.subr.bf16.mxu0 0
      %261 = vmatpush1.bf16.msra.mxu0 0
      %262 = vmatprep.subr.bf16.mxu0 0
      %263 = vmatpush1.bf16.msra.mxu0 0
      %264 = vmatprep.subr.bf16.mxu0 0
      %265 = vmatpush1.bf16.msra.mxu0 0
      %266 = vmatprep.subr.bf16.mxu0 0
      %267 = vmatpush1.bf16.msra.mxu0 0
      %268 = vmatprep.subr.bf16.mxu0 0
      %269 = vmatpush1.bf16.msra.mxu0 0
      %270 = vmatprep.subr.bf16.mxu0 0
      %271 = vmatpush1.bf16.msra.mxu0 0
      %272 = vmatprep.subr.bf16.mxu0 0
      %273 = vmatpush1.bf16.msra.mxu0 0
      %274 = vmatprep.subr.bf16.mxu0 0
      %275 = vmatpush1.bf16.msra.mxu0 0
      %276 = vmatprep.subr.bf16.mxu0 0
      %277 = vmatpush1.bf16.msra.mxu0 0
      %278 = vmatprep.mubr.bf16.mxu0 0
      %279 = vmatmul.mubr.bf16.gmra.mrb[0].mxu0 %v240
      %v280 = vpop.f32.mrb[0].mxu0
      %v281 = vadd.f32 0.0, %v280
      %v282 = vpop.f32.mrb[0].mxu0
      %v283 = vpop.f32.mrb[0].mxu0
      %v284 = vpop.f32.mrb[0].mxu0
      %285 = vdwg.mxu0
      %v286 = vpack.c.bf16 %v281, %v281
      %vm287 = vcmask 519168
      %288 = vst.msk [vmem:[%s209] sm:$0xf] %vm287, %v286
      %vm289 = vcmask 523264
      %v290 = vsel %vm289, %v281, 0.0
      %291 = vadd.xlane.f32.xlu0 %v290
      %v292 = vpop.xlane.xlu0 %291
      %v293 = vmul.f32 %v281, %v281
      %v294 = vsel %vm289, %v293, 0.0
      %295 = vadd.xlane.f32.xlu0 %v294
      %v296 = vpop.xlane.xlu0 %295
      %vm297 = vcmask 7168
      %v298 = vsel %vm297, %v292, %v296
      %vm299 = vcmask 15360
      %300 = vst.msk [vmem:[%s214] sm:$0xff] %vm299, %v298
      %p301 = scmp.lt.s32.totalorder %s19, 1
      %s302 = scalar_select %p301, %s19, 1
      %p303 = scmp.lt.s32.totalorder %s20, 0
      %s304 = scalar_select %p303, %s20, 0
      %s305 = sadd.s32 %s304, %s302
      %s306 = smul.addr %s305, 4
      %s307 = scalar_lea.vmem %s2, %s306
      %s308 = sadd.s32 %s19, %s20
      %p309 = scmp.lt.s32.totalorder %s308, 1
      %s310 = scalar_select %p309, %s308, 1
      %s311 = smul.addr %s310, 8
      %s312 = scalar_lea.vmem %s3, %s311
      // Predicated region
      $region29: #{conv_block_forward.2} parent=27 // pred_check
        %p313 = pneg %p96
      $region30: #{conv_block_forward.2} parent=27 // pred_check_branch
        %315 = sbr.rel (%p313) target = $region32
      $region31: #{conv_block_forward.2} parent=27 // pred_region
        _
      $region32: #{conv_block_forward.2} parent=27 // pred_fallthru
        _
      // Predicated region
      $region33: #{conv_block_forward.2} parent=27 // pred_check
        %p316 = pneg %p124
      $region34: #{conv_block_forward.2} parent=27 // pred_check_branch
        %318 = sbr.rel (%p316) target = $region36
      $region35: #{conv_block_forward.2} parent=27 // pred_region
        %s319 = sadd.s32 %s19, %s20
      $region36: #{conv_block_forward.2} parent=27 // pred_fallthru
        _
    $region28: #{conv_block_forward.2} parent=5 // pred_fallthru
      _
    %p320 = scmp.le.s32.totalorder 2, %s10
    // Predicated region
    $region37: #{conv_block_forward.2} parent=5 // pred_check
      %p321 = pneg %p320
    $region38: #{conv_block_forward.2} parent=5 // pred_check_branch
      %323 = sbr.rel (%p321) target = $region40
    $region39: #{conv_block_forward.2} parent=5 // pred_region
      %s324 = ssub.s32 %s10, 2
      // Predicated region
      $region41: #{conv_block_forward.2} parent=39 // pred_check
        %p325 = pneg %p102
      $region42: #{conv_block_forward.2} parent=39 // pred_check_branch
        %327 = sbr.rel (%p325) target = $region44
      $region43: #{conv_block_forward.2} parent=39 // pred_region
        %p328 = scmp.lt.s32.totalorder %s21, 1
        %s329 = scalar_select %p328, %s21, 1
        %p330 = scmp.lt.s32.totalorder %s22, 0
        %s331 = scalar_select %p330, %s22, 0
        %s332 = sadd.s32 %s331, %s329
        %s333 = smul.addr %s332, 4
        %s334 = scalar_lea.vmem %s2, %s333
      $region44: #{conv_block_forward.2} parent=39 // pred_fallthru
        _
      // Predicated region
      $region45: #{conv_block_forward.2} parent=39 // pred_check
        %p335 = pneg %p130
      $region46: #{conv_block_forward.2} parent=39 // pred_check_branch
        %337 = sbr.rel (%p335) target = $region48
      $region47: #{conv_block_forward.2} parent=39 // pred_region
        %s338 = sadd.s32 %s21, %s22
        %p339 = scmp.lt.s32.totalorder %s338, 1
        %s340 = scalar_select %p339, %s338, 1
        %s341 = smul.addr %s340, 8
        %s342 = scalar_lea.vmem %s3, %s341
      $region48: #{conv_block_forward.2} parent=39 // pred_fallthru
        _
    $region40: #{conv_block_forward.2} parent=5 // pred_fallthru
      _
  $region6: #{conv_block_forward.2} parent=0 // loop_footer
    %s14 = sadd.s32 1, %s10
  $region7: #{conv_block_forward.2} parent=0 // loop_footer_branch
    %9 = sbr.rel target = $region3
  $region8: #{conv_block_forward.2} parent=0 // loop_exit
    _

</llo_original>
